<compile_context>
chip_gen: v7x
topology: tpu7x:2x2x1
jax: 0.10.0
libtpu: 0.0.40
codegen_flags: <defaults>
</compile_context>

<pallas_src>
import functools

import jax
import jax.numpy as jnp
from jax.experimental import pallas as pl
from jax.experimental.pallas import tpu as pltpu


# ----------------------------------------------------------------------------
# device / tiling helpers (generation-aware)
# ----------------------------------------------------------------------------
def _round_up(x, m):
    return (x + m - 1) // m * m


def _vmem_capacity_bytes():
    try:
        return int(pltpu.get_tpu_info().vmem_capacity_bytes)
    except Exception:
        return 64 << 20          # conservative fallback: v7x per-TensorCore VMEM


def _vmem_budget():
    # leave headroom for compiler-internal scratch / semaphores / regalloc
    return int(_vmem_capacity_bytes() * 0.70)


def _pick_tn(H, V):
    """Vocab tile (lanes). The (H, tn) bf16 weight tile is double-buffered and
    stays resident across the inner token sweep; cap it at ~45% of budget
    (v5e/v6e 128 MiB -> tn up to 2048 at H=4k; v7x 64 MiB -> ~1024)."""
    budget = _vmem_budget()
    tn = 2048
    while tn > 128 and 2 * (H * tn * 2) > int(budget * 0.45):
        tn //= 2
    return min(tn, _round_up(max(V, 1), 128))


def _pick_tm(rows, H):
    """Token tile (sublanes). The (tm, H) bf16 hidden tile is the streamed
    operand; cap its double-buffered footprint at ~25% of budget."""
    budget = _vmem_budget()
    tm = 512
    while tm > 8 and 2 * (tm * H * 2) > int(budget * 0.25):
        tm //= 2
    return min(tm, _round_up(max(rows, 1), 8))


def _vmem_limit(nbytes_estimate):
    cap = int(_vmem_capacity_bytes() * 0.85)
    return int(min(max(nbytes_estimate, 16 << 20), cap))


# ----------------------------------------------------------------------------
# One-time LM-head preparation (done at model-load time, NOT per forward)
# ----------------------------------------------------------------------------
class PreparedLMHead:
    def __init__(self, weight, vocab_size=None):
        V, H = weight.shape
        self.vocab_size = int(vocab_size) if vocab_size is not None else int(V)
        self.hidden_size = int(H)
        self.tn = _pick_tn(H, V)
        vpad = _round_up(V, self.tn)
        w = jnp.asarray(weight, jnp.bfloat16).T                      # [H, V]
        if vpad != V:
            w = jnp.pad(w, ((0, 0), (0, vpad - V)))
        self.w = w                                                   # [H, Vpad]
        self.vpad = vpad


def prepare_lm_head(weight, vocab_size=None):
    return PreparedLMHead(weight, vocab_size)


# ----------------------------------------------------------------------------
# Kernel 1: plain tiled matmul  logits = hidden @ W  (W pre-transposed [H,V])
# Used only for the no-logprob / decode path (weight streamed once over B rows)
# ----------------------------------------------------------------------------
def _matmul_kernel(h_ref, w_ref, o_ref):
    o_ref[...] = jax.lax.dot_general(
        h_ref[...], w_ref[...],
        dimension_numbers=(((1,), (0,)), ((), ())),                  # [tm,H]@[H,tn]
        preferred_element_type=jnp.float32,
    ).astype(o_ref.dtype)


def last_logits_matmul(last_hidden, lm_head: PreparedLMHead):
    B, H = last_hidden.shape
    tn, Vpad = lm_head.tn, lm_head.vpad
    tm = _pick_tm(B, H)
    Bpad = _round_up(B, tm)
    h = jnp.pad(last_hidden.astype(jnp.bfloat16), ((0, Bpad - B), (0, 0)))

    need = 2 * H * tn * 2 + 2 * tm * H * 2 + 2 * tm * tn * 4 + (4 << 20)
    out = pl.pallas_call(
        _matmul_kernel,
        out_shape=jax.ShapeDtypeStruct((Bpad, Vpad), jnp.float32),
        grid_spec=pltpu.PrefetchScalarGridSpec(
            num_scalar_prefetch=0,
            grid=(Bpad // tm, Vpad // tn),
            in_specs=[
                pl.BlockSpec((tm, H), lambda i, j: (i, 0)),
                pl.BlockSpec((H, tn), lambda i, j: (0, j)),
            ],
            out_specs=pl.BlockSpec((tm, tn), lambda i, j: (i, j)),
        ),
        compiler_params=pltpu.CompilerParams(
            dimension_semantics=("parallel", "parallel"),
            vmem_limit_bytes=_vmem_limit(need),
        ),
    )(h, lm_head.w)
    return out[:B, :lm_head.vocab_size]


# ----------------------------------------------------------------------------
# Kernel 2: FUSED pass (logprob path).  Grid = (vocab tiles [outer],
# token tiles [inner]); the weight tile is resident over the token sweep, so
# the full H x V weight is streamed from HBM exactly once per forward.
#   - online softmax + in-kernel gather -> per-token next-token logprob [T,1]
#   - 0/1 selection matmul scatters last-position logits rows into a
#     resident [Bpad, tn] output block -> last_logits without a second pass.
# ----------------------------------------------------------------------------
def _fused_kernel(h_ref, w_ref, ids_ref, lastidx_ref,       # inputs
                  last_ref, lp_ref,                          # outputs
                  m_sc, l_sc, sel_sc,                        # scratch
                  *, vocab_size, need_mask):
    j = pl.program_id(0)                 # vocab tile (outer)
    i = pl.program_id(1)                 # token tile (inner)
    nj = pl.num_programs(0)
    tm = h_ref.shape[0]
    tn = w_ref.shape[1]
    Bp = lastidx_ref.shape[0]

    # [tm, tn] f32 logits tile on the MXU
    logits = jax.lax.dot_general(
        h_ref[...], w_ref[...],
        dimension_numbers=(((1,), (0,)), ((), ())),
        preferred_element_type=jnp.float32)

    # tile-local column iota; compared against scalar / per-row offsets so no
    # per-step full-tile "global column" add is needed.
    local_col = jax.lax.broadcasted_iota(jnp.int32, (tm, tn), 1)
    if need_mask:
        # only the last vocab tile actually has padded columns; elsewhere this
        # compare is all-true (single VPU op per element).
        logits = jnp.where(local_col < (vocab_size - j * tn), logits, -1e30)

    # ---- fused last-position logits scatter --------------------------------
    row_ids = i * tm + jax.lax.broadcasted_iota(jnp.int32, (Bp, tm), 1)
    sel = (lastidx_ref[...] == row_ids).astype(jnp.bfloat16)        # [Bp, tm] 0/1

    @pl.when(i == 0)
    def _():
        last_ref[...] = jnp.zeros_like(last_ref)

    # tiny bf16 MXU matmul; each last-index hits exactly one token tile, so
    # accumulating over i deposits exactly one logits row per batch element.
    last_ref[...] += jax.lax.dot_general(
        sel, logits.astype(jnp.bfloat16),
        dimension_numbers=(((1,), (0,)), ((), ())),
        preferred_element_type=jnp.float32)

    # ---- online softmax over vocab tiles (outer axis), per token row -------
    @pl.when(j == 0)
    def _():
        m_sc[i] = jnp.full((tm, 1), -jnp.inf, jnp.float32)
        l_sc[i] = jnp.zeros((tm, 1), jnp.float32)
        sel_sc[i] = jnp.zeros((tm, 1), jnp.float32)

    m_prev = m_sc[i]
    m_new = jnp.maximum(m_prev, jnp.max(logits, axis=-1, keepdims=True))
    p = jnp.exp(logits - m_new)
    l_sc[i] = jnp.exp(m_prev - m_new) * l_sc[i] + jnp.sum(p, axis=-1, keepdims=True)
    m_sc[i] = m_new

    # in-kernel gather of the next-token logit (one column matches per row;
    # ids < vocab_size so padded columns can never match).
    match = local_col == (ids_ref[...] - j * tn)                    # [tm, tn]
    sel_sc[i] += jnp.sum(jnp.where(match, logits, 0.0), axis=-1, keepdims=True)

    @pl.when(j == nj - 1)
    def _():
        # reference semantics: log(softmax(logits) + 1e-6)[next_id]
        sm = jnp.exp(sel_sc[i] - m_sc[i]) / l_sc[i]                 # exact divide
        lp_ref[...] = jnp.log(sm + 1e-6)


def fused_logprobs_and_last_logits(hidden, next_ids, last_index,
                                   lm_head: PreparedLMHead):
    """hidden [T,H], next_ids [T] i32, last_index [B] i32 ->
       (last_logits [B, vocab_size] f32, token_logprobs [T] f32)."""
    T, H = hidden.shape
    B = last_index.shape[0]
    tn, Vpad = lm_head.tn, lm_head.vpad
    tm = _pick_tm(T, H)
    Tpad = _round_up(T, tm)
    Bpad = _round_up(B, 8)
    num_i = Tpad // tm
    num_j = Vpad // tn

    h = jnp.pad(hidden.astype(jnp.bfloat16), ((0, Tpad - T), (0, 0)))
    ids = jnp.pad(next_ids.astype(jnp.int32), (0, Tpad - T)).reshape(Tpad, 1)
    lidx = jnp.pad(last_index.astype(jnp.int32), (0, Bpad - B),
                   constant_values=-1).reshape(Bpad, 1)

    kernel = functools.partial(_fused_kernel,
                               vocab_size=lm_head.vocab_size,
                               need_mask=(Vpad != lm_head.vocab_size))

    need = (2 * H * tn * 2            # weight tile (double-buffered, bf16)
            + 2 * tm * H * 2          # hidden tile (double-buffered, bf16)
            + 2 * Bpad * tn * 4       # resident last_logits block
            + 2 * tm * 128 * 4        # lp out block
            + 3 * Tpad * 128 * 4      # m/l/sel scratch (lane-padded)
            + (6 << 20))              # headroom

    last_logits, lp = pl.pallas_call(
        kernel,
        out_shape=(jax.ShapeDtypeStruct((Bpad, Vpad), jnp.float32),
                   jax.ShapeDtypeStruct((Tpad, 1), jnp.float32)),
        grid_spec=pltpu.PrefetchScalarGridSpec(
            num_scalar_prefetch=0,
            grid=(num_j, num_i),                              # vocab outer, token inner
            in_specs=[
                pl.BlockSpec((tm, H), lambda j, i: (i, 0)),   # hidden (streamed)
                pl.BlockSpec((H, tn), lambda j, i: (0, j)),   # weight (resident over i)
                pl.BlockSpec((tm, 1), lambda j, i: (i, 0)),   # next-token ids
                pl.BlockSpec((Bpad, 1), lambda j, i: (0, 0)), # last-row indices
            ],
            out_specs=[
                pl.BlockSpec((Bpad, tn), lambda j, i: (0, j)),  # last logits
                pl.BlockSpec((tm, 1), lambda j, i: (i, 0)),     # token logprobs
            ],
            scratch_shapes=[pltpu.VMEM((num_i, tm, 1), jnp.float32)] * 3,
        ),
        compiler_params=pltpu.CompilerParams(
            dimension_semantics=("arbitrary", "arbitrary"),
            vmem_limit_bytes=_vmem_limit(need),
        ),
    )(h, lm_head.w, ids, lidx)

    return last_logits[:B, :lm_head.vocab_size], lp[:T, 0]


# ----------------------------------------------------------------------------
# compute_normalized_logprobs (pure-JAX glue; mirrors the PyTorch reference but
# consumes the already-gathered per-token next-token logprobs)
# ----------------------------------------------------------------------------
def compute_normalized_logprobs(token_logprobs, extend_lens):
    T = token_logprobs.shape[0]
    B = extend_lens.shape[0]
    num_sel = T - B

    # get_selected_logprob: drop each sequence's last position, compact the rest
    ends = jnp.cumsum(extend_lens)
    pos = jnp.arange(T, dtype=jnp.int32)
    seq_id = jnp.searchsorted(ends, pos, side="right").astype(jnp.int32)
    is_last = pos == (ends[seq_id] - 1)
    out_idx = jnp.where(is_last, num_sel, pos - seq_id)
    logprobs = jnp.zeros((num_sel,), jnp.float32).at[out_idx].set(
        token_logprobs.astype(jnp.float32), mode="drop")

    cumsum = jnp.cumsum(logprobs, dtype=jnp.float32)
    lens_m1 = extend_lens - 1
    end = jnp.cumsum(lens_m1)
    start = jnp.concatenate([jnp.zeros((1,), end.dtype), end[:-1]])
    end = end - 1
    sum_logp = cumsum[end] - cumsum[start] + logprobs[start]
    return sum_logp / lens_m1.astype(jnp.float32)


# ----------------------------------------------------------------------------
# LogitsProcessor.forward
# ----------------------------------------------------------------------------
def logits_processor_forward(input_ids, hidden_states, lm_head, seq_lens,
                             prefix_lens, return_normalized_logprob=True,
                             decode_mode=False):
    extend_lens = seq_lens - prefix_lens
    # TODO(synk): tensor_model_parallel_all_gather omitted (tp_size == 1 here).

    if not return_normalized_logprob:
        if decode_mode:
            last_hidden = hidden_states
        else:
            last_index = jnp.cumsum(extend_lens) - 1
            last_hidden = hidden_states[last_index]
        return last_logits_matmul(last_hidden, lm_head), None

    # prefill-with-logprobs: single fused pass (weight streamed from HBM once)
    last_index = (jnp.cumsum(extend_lens) - 1).astype(jnp.int32)
    T = hidden_states.shape[0]
    # TODO(synk): the final row's "next id" is clamped to itself; that row is
    # dropped by compute_normalized_logprobs, matching the reference.
    next_ids = input_ids[jnp.minimum(jnp.arange(T, dtype=jnp.int32) + 1, T - 1)]
    last_logits, token_lp = fused_logprobs_and_last_logits(
        hidden_states, next_ids, last_index, lm_head)
    normalized_logprobs = compute_normalized_logprobs(token_lp, extend_lens)
    return last_logits, normalized_logprobs


# ----------------------------------------------------------------------------
# main
# ----------------------------------------------------------------------------
if __name__ == "__main__":
    key = jax.random.PRNGKey(0)
    k1, k2, k3 = jax.random.split(key, 3)

    T, H, V = 16, 128, 250                               # tokens, hidden, vocab
    seq_lens = jnp.array([9, 7], dtype=jnp.int32)        # 2 sequences, sum == T
    prefix_lens = jnp.array([0, 0], dtype=jnp.int32)

    hidden_states = jax.random.normal(k1, (T, H), dtype=jnp.float32)
    weight = 0.02 * jax.random.normal(k2, (V, H), dtype=jnp.float32)
    input_ids = jax.random.randint(k3, (T,), 0, V, dtype=jnp.int32)

    lm_head = prepare_lm_head(weight, vocab_size=V)      # one-time, load-time

    # logprob (prefill) path: fused single-weight-stream kernel
    last_logits, normalized_logprobs = logits_processor_forward(
        input_ids, hidden_states, lm_head, seq_lens, prefix_lens,
        return_normalized_logprob=True)
    last_logits = jax.block_until_ready(last_logits)
    normalized_logprobs = jax.block_until_ready(normalized_logprobs)

    # no-logprob path: standalone last-logits matmul kernel
    last_only, none_lp = logits_processor_forward(
        input_ids, hidden_states, lm_head, seq_lens, prefix_lens,
        return_normalized_logprob=False)
    last_only = jax.block_until_ready(last_only)

    # ---- plain-JAX reference (same bf16 operands, f32 accumulate) -----------
    extend_lens = seq_lens - prefix_lens
    last_index = jnp.cumsum(extend_lens) - 1
    h_bf = hidden_states.astype(jnp.bfloat16)
    w_bf = weight.astype(jnp.bfloat16)
    logits_ref = jax.lax.dot_general(
        h_bf, w_bf, dimension_numbers=(((1,), (1,)), ((), ())),
        preferred_element_type=jnp.float32)
    lp_full_ref = jnp.log(jax.nn.softmax(logits_ref, axis=-1) + 1e-6)
    next_ids = input_ids[jnp.minimum(jnp.arange(T) + 1, T - 1)]
    token_lp_ref = lp_full_ref[jnp.arange(T), next_ids]
    normalized_ref = compute_normalized_logprobs(token_lp_ref, extend_lens)
    last_logits_ref = logits_ref[last_index]

    # exercise the fused kernel's per-token logprob output directly too
    _, token_lp = fused_logprobs_and_last_logits(
        hidden_states, next_ids.astype(jnp.int32),
        last_index.astype(jnp.int32), lm_head)
    token_lp = jax.block_until_ready(token_lp)

    assert last_logits.shape == (2, V)
    assert normalized_logprobs.shape == (2,)
    assert none_lp is None
    assert jnp.allclose(last_logits, last_logits_ref, atol=2e-2, rtol=2e-2)
    assert jnp.allclose(last_only, last_logits_ref, atol=2e-2, rtol=2e-2)
    assert jnp.allclose(token_lp, token_lp_ref, atol=2e-2, rtol=2e-2)
    assert jnp.allclose(normalized_logprobs, normalized_ref, atol=2e-2, rtol=2e-2)
    assert bool(jnp.all(jnp.isfinite(normalized_logprobs)))

    print("KERNEL_OK")
</pallas_src>

<mosaic_0001>
module attributes {stable_mosaic.version = 11 : i64} {
  func.func @_fused_kernel(%arg0: i32, %arg1: i32, %arg2: memref<16x128xbf16, #tpu.memory_space<vmem>>, %arg3: memref<128x256xbf16, #tpu.memory_space<vmem>>, %arg4: memref<16x1xi32, #tpu.memory_space<vmem>>, %arg5: memref<8x1xi32, #tpu.memory_space<vmem>>, %arg6: memref<8x256xf32, #tpu.memory_space<vmem>>, %arg7: memref<16x1xf32, #tpu.memory_space<vmem>>, %arg8: memref<1x16x1xf32, #tpu.memory_space<vmem>>, %arg9: memref<1x16x1xf32, #tpu.memory_space<vmem>>, %arg10: memref<1x16x1xf32, #tpu.memory_space<vmem>>) attributes {dimension_semantics = [#tpu.dimension_semantics<arbitrary>, #tpu.dimension_semantics<arbitrary>], iteration_bounds = array<i64: 1, 1>, scalar_prefetch = 0 : i64, scratch_operands = 3 : i64, tpu.core_type = #tpu.core_type<tc>, window_params = [{transform_indices = @transform_0, window_bounds = array<i64: 16, 128>}, {transform_indices = @transform_1, window_bounds = array<i64: 128, 256>}, {transform_indices = @transform_2, window_bounds = array<i64: 16, 1>}, {pipeline_mode = #tpu.pipeline_mode<synchronous>, transform_indices = @transform_3, window_bounds = array<i64: 8, 1>}, {transform_indices = @transform_4, window_bounds = array<i64: 8, 256>}, {transform_indices = @transform_5, window_bounds = array<i64: 16, 1>}]} {
    %c0 = arith.constant 0 : index
    %c0_0 = arith.constant 0 : index
    %0 = vector.load %arg2[%c0, %c0_0] : memref<16x128xbf16, #tpu.memory_space<vmem>>, vector<16x128xbf16>
    %c0_1 = arith.constant 0 : index
    %c0_2 = arith.constant 0 : index
    %1 = vector.load %arg3[%c0_1, %c0_2] : memref<128x256xbf16, #tpu.memory_space<vmem>>, vector<128x256xbf16>
    %cst = arith.constant dense<0.000000e+00> : vector<16x256xf32>
    %2 = tpu.matmul %0, %1, %cst {dimension_numbers = #tpu.dot_dimension_numbers<[1], [0], [0], [1], [0, 0, 1, 1], [], []>} : vector<16x128xbf16>, vector<128x256xbf16>, vector<16x256xf32> -> vector<16x256xf32>
    %3 = tpu.iota {dimensions = array<i32: 1>} : vector<16x256xi32>
    %c256_i32 = arith.constant 256 : i32
    %4 = arith.muli %arg0, %c256_i32 : i32
    %c250_i32 = arith.constant 250 : i32
    %5 = arith.subi %c250_i32, %4 : i32
    %6 = vector.broadcast %5 : i32 to vector<16x256xi32>
    %7 = arith.cmpi slt, %3, %6 : vector<16x256xi32>
    %cst_3 = arith.constant -1.000000e+30 : f32
    %8 = vector.broadcast %cst_3 : f32 to vector<16x256xf32>
    %9 = arith.select %7, %2, %8 : vector<16x256xi1>, vector<16x256xf32>
    %c16_i32 = arith.constant 16 : i32
    %10 = arith.muli %arg1, %c16_i32 : i32
    %11 = tpu.iota {dimensions = array<i32: 1>} : vector<8x16xi32>
    %12 = vector.broadcast %10 : i32 to vector<8x16xi32>
    %13 = arith.addi %12, %11 : vector<8x16xi32>
    %c0_4 = arith.constant 0 : index
    %c0_5 = arith.constant 0 : index
    %14 = vector.load %arg5[%c0_4, %c0_5] : memref<8x1xi32, #tpu.memory_space<vmem>>, vector<8x1xi32>
    %15 = vector.broadcast %14 : vector<8x1xi32> to vector<8x16xi32>
    %16 = arith.cmpi eq, %15, %13 : vector<8x16xi32>
    %17 = arith.extui %16 : vector<8x16xi1> to vector<8x16xi32>
    %18 = arith.sitofp %17 : vector<8x16xi32> to vector<8x16xf32>
    %19 = arith.truncf %18 : vector<8x16xf32> to vector<8x16xbf16>
    %c0_i32 = arith.constant 0 : i32
    %20 = arith.cmpi eq, %arg1, %c0_i32 : i32
    %21 = arith.extui %20 : i1 to i32
    %c0_i32_6 = arith.constant 0 : i32
    %22 = arith.cmpi ne, %21, %c0_i32_6 : i32
    scf.if %22 {
      %cst_35 = arith.constant 0.000000e+00 : f32
      %78 = vector.broadcast %cst_35 : f32 to vector<8x256xf32>
      %c0_36 = arith.constant 0 : index
      %c0_37 = arith.constant 0 : index
      %79 = vector.load %arg6[%c0_36, %c0_37] : memref<8x256xf32, #tpu.memory_space<vmem>>, vector<8x256xf32>
      tpu.vector_store %arg6[%c0_36, %c0_37], %78 {strides = array<i32>} : memref<8x256xf32, #tpu.memory_space<vmem>>, vector<8x256xf32>,
    } else {
    }
    %c0_7 = arith.constant 0 : index
    %c0_8 = arith.constant 0 : index
    %23 = vector.load %arg6[%c0_7, %c0_8] : memref<8x256xf32, #tpu.memory_space<vmem>>, vector<8x256xf32>
    %24 = arith.truncf %9 : vector<16x256xf32> to vector<16x256xbf16>
    %cst_9 = arith.constant dense<0.000000e+00> : vector<8x256xf32>
    %25 = tpu.matmul %19, %24, %cst_9 {dimension_numbers = #tpu.dot_dimension_numbers<[1], [0], [0], [1], [0, 0, 1, 1], [], []>} : vector<8x16xbf16>, vector<16x256xbf16>, vector<8x256xf32> -> vector<8x256xf32>
    %26 = arith.addf %23, %25 : vector<8x256xf32>
    %c0_10 = arith.constant 0 : index
    %c0_11 = arith.constant 0 : index
    %27 = vector.load %arg6[%c0_10, %c0_11] : memref<8x256xf32, #tpu.memory_space<vmem>>, vector<8x256xf32>
    tpu.vector_store %arg6[%c0_10, %c0_11], %26 {strides = array<i32>} : memref<8x256xf32, #tpu.memory_space<vmem>>, vector<8x256xf32>,
    %c0_i32_12 = arith.constant 0 : i32
    %28 = arith.cmpi eq, %arg0, %c0_i32_12 : i32
    %29 = arith.extui %28 : i1 to i32
    %c0_i32_13 = arith.constant 0 : i32
    %30 = arith.cmpi ne, %29, %c0_i32_13 : i32
    scf.if %30 {
      %cst_35 = arith.constant 0xFF800000 : f32
      %78 = vector.broadcast %cst_35 : f32 to vector<16x1xf32>
      %79 = arith.index_cast %arg1 : i32 to index
      %c0_36 = arith.constant 0 : index
      %c0_37 = arith.constant 0 : index
      %80 = vector.load %arg8[%79, %c0_36, %c0_37] : memref<1x16x1xf32, #tpu.memory_space<vmem>>, vector<1x16x1xf32>
      %81 = vector.shape_cast %80 : vector<1x16x1xf32> to vector<16x1xf32>
      %82 = vector.shape_cast %78 : vector<16x1xf32> to vector<1x16x1xf32>
      tpu.vector_store %arg8[%79, %c0_36, %c0_37], %82 {strides = array<i32>} : memref<1x16x1xf32, #tpu.memory_space<vmem>>, vector<1x16x1xf32>,
      %cst_38 = arith.constant 0.000000e+00 : f32
      %83 = vector.broadcast %cst_38 : f32 to vector<16x1xf32>
      %84 = arith.index_cast %arg1 : i32 to index
      %c0_39 = arith.constant 0 : index
      %c0_40 = arith.constant 0 : index
      %85 = vector.load %arg9[%84, %c0_39, %c0_40] : memref<1x16x1xf32, #tpu.memory_space<vmem>>, vector<1x16x1xf32>
      %86 = vector.shape_cast %85 : vector<1x16x1xf32> to vector<16x1xf32>
      %87 = vector.shape_cast %83 : vector<16x1xf32> to vector<1x16x1xf32>
      tpu.vector_store %arg9[%84, %c0_39, %c0_40], %87 {strides = array<i32>} : memref<1x16x1xf32, #tpu.memory_space<vmem>>, vector<1x16x1xf32>,
      %cst_41 = arith.constant 0.000000e+00 : f32
      %88 = vector.broadcast %cst_41 : f32 to vector<16x1xf32>
      %89 = arith.index_cast %arg1 : i32 to index
      %c0_42 = arith.constant 0 : index
      %c0_43 = arith.constant 0 : index
      %90 = vector.load %arg10[%89, %c0_42, %c0_43] : memref<1x16x1xf32, #tpu.memory_space<vmem>>, vector<1x16x1xf32>
      %91 = vector.shape_cast %90 : vector<1x16x1xf32> to vector<16x1xf32>
      %92 = vector.shape_cast %88 : vector<16x1xf32> to vector<1x16x1xf32>
      tpu.vector_store %arg10[%89, %c0_42, %c0_43], %92 {strides = array<i32>} : memref<1x16x1xf32, #tpu.memory_space<vmem>>, vector<1x16x1xf32>,
    } else {
    }
    %31 = arith.index_cast %arg1 : i32 to index
    %c0_14 = arith.constant 0 : index
    %c0_15 = arith.constant 0 : index
    %32 = vector.load %arg8[%31, %c0_14, %c0_15] : memref<1x16x1xf32, #tpu.memory_space<vmem>>, vector<1x16x1xf32>
    %33 = vector.shape_cast %32 : vector<1x16x1xf32> to vector<16x1xf32>
    %cst_16 = arith.constant dense<0xFF800000> : vector<16xf32>
    %34 = vector.multi_reduction <maximumf>, %9, %cst_16 [1] : vector<16x256xf32> to vector<16xf32>
    %35 = vector.shape_cast %34 : vector<16xf32> to vector<16x1xf32>
    %36 = arith.maximumf %33, %35 : vector<16x1xf32>
    %37 = vector.broadcast %36 : vector<16x1xf32> to vector<16x256xf32>
    %38 = arith.subf %9, %37 : vector<16x256xf32>
    %39 = math.exp %38 : vector<16x256xf32>
    %40 = arith.subf %33, %36 : vector<16x1xf32>
    %41 = math.exp %40 : vector<16x1xf32>
    %42 = arith.index_cast %arg1 : i32 to index
    %c0_17 = arith.constant 0 : index
    %c0_18 = arith.constant 0 : index
    %43 = vector.load %arg9[%42, %c0_17, %c0_18] : memref<1x16x1xf32, #tpu.memory_space<vmem>>, vector<1x16x1xf32>
    %44 = vector.shape_cast %43 : vector<1x16x1xf32> to vector<16x1xf32>
    %45 = arith.mulf %41, %44 : vector<16x1xf32>
    %cst_19 = arith.constant dense<0.000000e+00> : vector<16xf32>
    %46 = vector.multi_reduction <add>, %39, %cst_19 [1] : vector<16x256xf32> to vector<16xf32>
    %47 = vector.shape_cast %46 : vector<16xf32> to vector<16x1xf32>
    %48 = arith.addf %45, %47 : vector<16x1xf32>
    %49 = arith.index_cast %arg1 : i32 to index
    %c0_20 = arith.constant 0 : index
    %c0_21 = arith.constant 0 : index
    %50 = vector.load %arg9[%49, %c0_20, %c0_21] : memref<1x16x1xf32, #tpu.memory_space<vmem>>, vector<1x16x1xf32>
    %51 = vector.shape_cast %50 : vector<1x16x1xf32> to vector<16x1xf32>
    %52 = vector.shape_cast %48 : vector<16x1xf32> to vector<1x16x1xf32>
    tpu.vector_store %arg9[%49, %c0_20, %c0_21], %52 {strides = array<i32>} : memref<1x16x1xf32, #tpu.memory_space<vmem>>, vector<1x16x1xf32>,
    %53 = arith.index_cast %arg1 : i32 to index
    %c0_22 = arith.constant 0 : index
    %c0_23 = arith.constant 0 : index
    %54 = vector.load %arg8[%53, %c0_22, %c0_23] : memref<1x16x1xf32, #tpu.memory_space<vmem>>, vector<1x16x1xf32>
    %55 = vector.shape_cast %54 : vector<1x16x1xf32> to vector<16x1xf32>
    %56 = vector.shape_cast %36 : vector<16x1xf32> to vector<1x16x1xf32>
    tpu.vector_store %arg8[%53, %c0_22, %c0_23], %56 {strides = array<i32>} : memref<1x16x1xf32, #tpu.memory_space<vmem>>, vector<1x16x1xf32>,
    %c0_24 = arith.constant 0 : index
    %c0_25 = arith.constant 0 : index
    %57 = vector.load %arg4[%c0_24, %c0_25] : memref<16x1xi32, #tpu.memory_space<vmem>>, vector<16x1xi32>
    %c256_i32_26 = arith.constant 256 : i32
    %58 = arith.muli %arg0, %c256_i32_26 : i32
    %59 = vector.broadcast %58 : i32 to vector<16x1xi32>
    %60 = arith.subi %57, %59 : vector<16x1xi32>
    %61 = vector.broadcast %60 : vector<16x1xi32> to vector<16x256xi32>
    %62 = arith.cmpi eq, %3, %61 : vector<16x256xi32>
    %63 = arith.index_cast %arg1 : i32 to index
    %c0_27 = arith.constant 0 : index
    %c0_28 = arith.constant 0 : index
    %64 = vector.load %arg10[%63, %c0_27, %c0_28] : memref<1x16x1xf32, #tpu.memory_space<vmem>>, vector<1x16x1xf32>
    %65 = vector.shape_cast %64 : vector<1x16x1xf32> to vector<16x1xf32>
    %cst_29 = arith.constant 0.000000e+00 : f32
    %66 = vector.broadcast %cst_29 : f32 to vector<16x256xf32>
    %67 = arith.select %62, %9, %66 : vector<16x256xi1>, vector<16x256xf32>
    %cst_30 = arith.constant dense<0.000000e+00> : vector<16xf32>
    %68 = vector.multi_reduction <add>, %67, %cst_30 [1] : vector<16x256xf32> to vector<16xf32>
    %69 = vector.shape_cast %68 : vector<16xf32> to vector<16x1xf32>
    %70 = arith.addf %65, %69 : vector<16x1xf32>
    %71 = arith.index_cast %arg1 : i32 to index
    %c0_31 = arith.constant 0 : index
    %c0_32 = arith.constant 0 : index
    %72 = vector.load %arg10[%71, %c0_31, %c0_32] : memref<1x16x1xf32, #tpu.memory_space<vmem>>, vector<1x16x1xf32>
    %73 = vector.shape_cast %72 : vector<1x16x1xf32> to vector<16x1xf32>
    %74 = vector.shape_cast %70 : vector<16x1xf32> to vector<1x16x1xf32>
    tpu.vector_store %arg10[%71, %c0_31, %c0_32], %74 {strides = array<i32>} : memref<1x16x1xf32, #tpu.memory_space<vmem>>, vector<1x16x1xf32>,
    %c0_i32_33 = arith.constant 0 : i32
    %75 = arith.cmpi eq, %arg0, %c0_i32_33 : i32
    %76 = arith.extui %75 : i1 to i32
    %c0_i32_34 = arith.constant 0 : i32
    %77 = arith.cmpi ne, %76, %c0_i32_34 : i32
    scf.if %77 {
      %78 = arith.index_cast %arg1 : i32 to index
      %c0_35 = arith.constant 0 : index
      %c0_36 = arith.constant 0 : index
      %79 = vector.load %arg10[%78, %c0_35, %c0_36] : memref<1x16x1xf32, #tpu.memory_space<vmem>>, vector<1x16x1xf32>
      %80 = vector.shape_cast %79 : vector<1x16x1xf32> to vector<16x1xf32>
      %81 = arith.index_cast %arg1 : i32 to index
      %c0_37 = arith.constant 0 : index
      %c0_38 = arith.constant 0 : index
      %82 = vector.load %arg8[%81, %c0_37, %c0_38] : memref<1x16x1xf32, #tpu.memory_space<vmem>>, vector<1x16x1xf32>
      %83 = vector.shape_cast %82 : vector<1x16x1xf32> to vector<16x1xf32>
      %84 = arith.subf %80, %83 : vector<16x1xf32>
      %85 = math.exp %84 : vector<16x1xf32>
      %86 = arith.index_cast %arg1 : i32 to index
      %c0_39 = arith.constant 0 : index
      %c0_40 = arith.constant 0 : index
      %87 = vector.load %arg9[%86, %c0_39, %c0_40] : memref<1x16x1xf32, #tpu.memory_space<vmem>>, vector<1x16x1xf32>
      %88 = vector.shape_cast %87 : vector<1x16x1xf32> to vector<16x1xf32>
      %89 = arith.divf %85, %88 : vector<16x1xf32>
      %cst_41 = arith.constant 9.99999997E-7 : f32
      %90 = vector.broadcast %cst_41 : f32 to vector<16x1xf32>
      %91 = arith.addf %89, %90 : vector<16x1xf32>
      %92 = math.log %91 : vector<16x1xf32>
      %c0_42 = arith.constant 0 : index
      %c0_43 = arith.constant 0 : index
      %93 = vector.load %arg7[%c0_42, %c0_43] : memref<16x1xf32, #tpu.memory_space<vmem>>, vector<16x1xf32>
      tpu.vector_store %arg7[%c0_42, %c0_43], %92 {strides = array<i32>} : memref<16x1xf32, #tpu.memory_space<vmem>>, vector<16x1xf32>,
    } else {
    }
    return
  }
  func.func @transform_0(%arg0: i32, %arg1: i32) -> (i32, i32) {
    %c0_i32 = arith.constant 0 : i32
    %c0_i32_0 = arith.constant 0 : i32
    return %arg1, %c0_i32 : i32, i32
  }
  func.func @transform_1(%arg0: i32, %arg1: i32) -> (i32, i32) {
    %c0_i32 = arith.constant 0 : i32
    %c0_i32_0 = arith.constant 0 : i32
    return %c0_i32, %arg0 : i32, i32
  }
  func.func @transform_2(%arg0: i32, %arg1: i32) -> (i32, i32) {
    %c0_i32 = arith.constant 0 : i32
    %c0_i32_0 = arith.constant 0 : i32
    return %arg1, %c0_i32 : i32, i32
  }
  func.func @transform_3(%arg0: i32, %arg1: i32) -> (i32, i32) {
    %c0_i32 = arith.constant 0 : i32
    %c0_i32_0 = arith.constant 0 : i32
    %c0_i32_1 = arith.constant 0 : i32
    return %c0_i32, %c0_i32_0 : i32, i32
  }
  func.func @transform_4(%arg0: i32, %arg1: i32) -> (i32, i32) {
    %c0_i32 = arith.constant 0 : i32
    %c0_i32_0 = arith.constant 0 : i32
    return %c0_i32, %arg0 : i32, i32
  }
  func.func @transform_5(%arg0: i32, %arg1: i32) -> (i32, i32) {
    %c0_i32 = arith.constant 0 : i32
    %c0_i32_0 = arith.constant 0 : i32
    return %arg1, %c0_i32 : i32, i32
  }
}

</mosaic_0001>

<llo_original>
// kernel: tpu_custom_call.1
$region0: #{tpu_custom_call.1}
  #allocation0 [shape = 'u32[]', space=smem, size = 0x4, offset = 0x4, fixed_abs, tag = 'smem constant byte address 0x4 - core index']
  #allocation1 [shape = 'u32[144,128]{1,0:T(1,128)}', space=vmem, size = 0x12000, scoped, tag = 'internal scratch']
  #allocation2 [shape = 'f32[1,16,1]{2,1,0:T(8,128)}', space=vmem, size = 0x2000, scoped, tag = 'scratch operand']
  #allocation3 [shape = 'f32[1,16,1]{2,1,0:T(8,128)}', space=vmem, size = 0x2000, scoped, tag = 'scratch operand']
  #allocation4 [shape = 'f32[1,16,1]{2,1,0:T(8,128)}', space=vmem, size = 0x2000, scoped, tag = 'scratch operand']
  %s0 = inlined_call_operand.vmem [shape: bf16[16,128], index: 0, kind: input, shape index: {}]
  %s1 = inlined_call_operand.hbm [shape: bf16[128,256], index: 1, kind: input, shape index: {}]
  %s2 = inlined_call_operand.vmem [shape: s32[16,1], index: 2, kind: input, shape index: {}]
  %s3 = inlined_call_operand.vmem [shape: s32[8,1], index: 3, kind: input, shape index: {}]
  %s4 = inlined_call_operand.hbm [shape: f32[8,256], index: 4, kind: output, shape index: {0}]
  %s5 = inlined_call_operand.vmem [shape: f32[16,1], index: 5, kind: output, shape index: {1}]
  %6 = xla_tuple %s4, %s5
  %s7 = sld [smem:[#allocation0]]
  $region50: #{tpu_custom_call.1} parent=0
    _
  %s9 = ssub.s32 1, %s7
  %s10 = scalar_select 0, %s9, %s7
  $region1: #{tpu_custom_call.1} parent=0
    #allocation5 [shape = 'u8[65536]{0}', space=vmem, size = 0x10000, scoped, tag = 'input window, operand 1, single buffered']
    #allocation6 [shape = 's32[1]{0}', space=sflag, size = 0x4, scoped, tag = 'scoped memory for tpu_custom_call.1']
    #allocation7 [shape = 's32[1]{0}', space=sflag, size = 0x4, scoped, tag = 'scoped memory for tpu_custom_call.1']
    #allocation8 [shape = 'u8[8192]{0}', space=vmem, size = 0x2000, scoped, tag = 'output window, operand 0, single buffered']
    %11 = vsyncpa [#allocation6], 0
    %12 = vsyncpa [#allocation7], 0
    // Predicated region
    $region2: #{tpu_custom_call.1} parent=1 // pred_check
      _
    $region3: #{tpu_custom_call.1} parent=1 // pred_check_branch
      %14 = sbr.rel (0) target = $region5
    $region4: #{tpu_custom_call.1} parent=1 // pred_region
      _
    $region5: #{tpu_custom_call.1} parent=1 // pred_fallthru
      _
    // Predicated region
    $region6: #{tpu_custom_call.1} parent=1 // pred_check
      _
    $region7: #{tpu_custom_call.1} parent=1 // pred_check_branch
      %16 = sbr.rel (0) target = $region9
    $region8: #{tpu_custom_call.1} parent=1 // pred_region
      %s18 = ssub.s32 2048, 2048
      %19 = vsyncadd [#allocation6], %s18
      %s20 = sshll.u32 [#allocation5], 4
      %s21 = int_to_ptr.vmem [resolvable:$true] %s20
      %26 = dma.hbm_to_vmem [thread:$0]  %s1, 2048, %s21, [#allocation6], 128, 128, 8
    $region9: #{tpu_custom_call.1} parent=1 // pred_fallthru
      _
    // Predicated region
    $region10: #{tpu_custom_call.1} parent=1 // pred_check
      _
    $region11: #{tpu_custom_call.1} parent=1 // pred_check_branch
      %28 = sbr.rel (0) target = $region13
    $region12: #{tpu_custom_call.1} parent=1 // pred_region
      _
    $region13: #{tpu_custom_call.1} parent=1 // pred_fallthru
      _
    // Predicated region
    $region14: #{tpu_custom_call.1} parent=1 // pred_check
      _
    $region15: #{tpu_custom_call.1} parent=1 // pred_check_branch
      %30 = sbr.rel (0) target = $region17
    $region16: #{tpu_custom_call.1} parent=1 // pred_region
      _
    $region17: #{tpu_custom_call.1} parent=1 // pred_fallthru
      _
    // Predicated region
    $region18: #{tpu_custom_call.1} parent=1 // pred_check
      _
    $region19: #{tpu_custom_call.1} parent=1 // pred_check_branch
      %32 = sbr.rel (0) target = $region21
    $region20: #{tpu_custom_call.1} parent=1 // pred_region
      %33 = dma.done [#allocation6], 2048
    $region21: #{tpu_custom_call.1} parent=1 // pred_fallthru
      _
    %v35 = vld [vmem:[%s0] sm:$0xf]
    %v36 = vld [vmem:[%s0 + $0x4] sm:$0xf]
    %v37 = vld [vmem:[#allocation5] sm:$0xff]
    %v38 = vld [vmem:[#allocation5 + $0x8] sm:$0xff]
    %v39 = vld [vmem:[#allocation5 + $0x10] sm:$0xff]
    %v40 = vld [vmem:[#allocation5 + $0x18] sm:$0xff]
    %v41 = vld [vmem:[#allocation5 + $0x20] sm:$0xff]
    %v42 = vld [vmem:[#allocation5 + $0x28] sm:$0xff]
    %v43 = vld [vmem:[#allocation5 + $0x30] sm:$0xff]
    %v44 = vld [vmem:[#allocation5 + $0x38] sm:$0xff]
    %v45 = vld [vmem:[#allocation5 + $0x40] sm:$0xff]
    %v46 = vld [vmem:[#allocation5 + $0x48] sm:$0xff]
    %v47 = vld [vmem:[#allocation5 + $0x50] sm:$0xff]
    %v48 = vld [vmem:[#allocation5 + $0x58] sm:$0xff]
    %v49 = vld [vmem:[#allocation5 + $0x60] sm:$0xff]
    %v50 = vld [vmem:[#allocation5 + $0x68] sm:$0xff]
    %v51 = vld [vmem:[#allocation5 + $0x70] sm:$0xff]
    %v52 = vld [vmem:[#allocation5 + $0x78] sm:$0xff]
    %v55 = vunpack.c.l.b16 %v35
    %v56 = vunpack.c.l.b16 %v36
    %v57 = vpack.c.b16 %v56, %v55
    %v75 = vunpack.c.l.b16 %v37
    %v76 = vunpack.c.h.b16 %v37
    %v77 = vunpack.c.l.b16 %v38
    %v78 = vunpack.c.h.b16 %v38
    %v79 = vunpack.c.l.b16 %v39
    %v80 = vunpack.c.h.b16 %v39
    %v81 = vunpack.c.l.b16 %v40
    %v82 = vunpack.c.h.b16 %v40
    %v83 = vunpack.c.l.b16 %v41
    %v84 = vunpack.c.h.b16 %v41
    %v85 = vunpack.c.l.b16 %v42
    %v86 = vunpack.c.h.b16 %v42
    %v87 = vunpack.c.l.b16 %v43
    %v88 = vunpack.c.h.b16 %v43
    %v89 = vunpack.c.l.b16 %v44
    %v90 = vunpack.c.h.b16 %v44
    %v91 = vunpack.c.l.b16 %v45
    %v92 = vunpack.c.h.b16 %v45
    %v93 = vunpack.c.l.b16 %v46
    %v94 = vunpack.c.h.b16 %v46
    %v95 = vunpack.c.l.b16 %v47
    %v96 = vunpack.c.h.b16 %v47
    %v97 = vunpack.c.l.b16 %v48
    %v98 = vunpack.c.h.b16 %v48
    %v99 = vunpack.c.l.b16 %v49
    %v100 = vunpack.c.h.b16 %v49
    %v101 = vunpack.c.l.b16 %v50
    %v102 = vunpack.c.h.b16 %v50
    %v103 = vunpack.c.l.b16 %v51
    %v104 = vunpack.c.h.b16 %v51
    %v105 = vunpack.c.l.b16 %v52
    %v106 = vunpack.c.h.b16 %v52
    %v107 = vpack.c.b16 %v77, %v75
    %v108 = vpack.c.b16 %v78, %v76
    %v109 = vpack.c.b16 %v81, %v79
    %v110 = vpack.c.b16 %v82, %v80
    %v111 = vpack.c.b16 %v85, %v83
    %v112 = vpack.c.b16 %v86, %v84
    %v113 = vpack.c.b16 %v89, %v87
    %v114 = vpack.c.b16 %v90, %v88
    %v115 = vpack.c.b16 %v93, %v91
    %v116 = vpack.c.b16 %v94, %v92
    %v117 = vpack.c.b16 %v97, %v95
    %v118 = vpack.c.b16 %v98, %v96
    %v119 = vpack.c.b16 %v101, %v99
    %v120 = vpack.c.b16 %v102, %v100
    %v121 = vpack.c.b16 %v105, %v103
    %v122 = vpack.c.b16 %v106, %v104
    %139 = vmatprep.subr.bf16.mxu0 %v108
    %140 = vmatpush1.bf16.msra.mxu0 %v107
    %141 = vmatprep.subr.bf16.mxu0 %v110
    %142 = vmatpush1.bf16.msra.mxu0 %v109
    %143 = vmatprep.subr.bf16.mxu0 %v112
    %144 = vmatpush1.bf16.msra.mxu0 %v111
    %145 = vmatprep.subr.bf16.mxu0 %v114
    %146 = vmatpush1.bf16.msra.mxu0 %v113
    %147 = vmatprep.subr.bf16.mxu0 %v116
    %148 = vmatpush1.bf16.msra.mxu0 %v115
    %149 = vmatprep.subr.bf16.mxu0 %v118
    %150 = vmatpush1.bf16.msra.mxu0 %v117
    %151 = vmatprep.subr.bf16.mxu0 %v120
    %152 = vmatpush1.bf16.msra.mxu0 %v119
    %153 = vmatprep.subr.bf16.mxu0 %v122
    %154 = vmatpush1.bf16.msra.mxu0 %v121
    %155 = vmatprep.subr.bf16.mxu0 0
    %156 = vmatpush1.bf16.msra.mxu0 0
    %157 = vmatprep.subr.bf16.mxu0 0
    %158 = vmatpush1.bf16.msra.mxu0 0
    %159 = vmatprep.subr.bf16.mxu0 0
    %160 = vmatpush1.bf16.msra.mxu0 0
    %161 = vmatprep.subr.bf16.mxu0 0
    %162 = vmatpush1.bf16.msra.mxu0 0
    %163 = vmatprep.subr.bf16.mxu0 0
    %164 = vmatpush1.bf16.msra.mxu0 0
    %165 = vmatprep.subr.bf16.mxu0 0
    %166 = vmatpush1.bf16.msra.mxu0 0
    %167 = vmatprep.subr.bf16.mxu0 0
    %168 = vmatpush1.bf16.msra.mxu0 0
    %169 = vmatprep.subr.bf16.mxu0 0
    %170 = vmatpush1.bf16.msra.mxu0 0
    %171 = vmatprep.mubr.bf16.mxu0 0
    %172 = vmatmul.mubr.bf16.gmra.mrb[0].mxu0 %v57
    %v173 = vpop.f32.mrb[0].mxu0
    %v174 = vadd.f32 0.0, %v173
    %v175 = vpop.f32.mrb[0].mxu0
    %v176 = vadd.f32 0.0, %v175
    %v177 = vpop.f32.mrb[0].mxu0
    %v178 = vadd.f32 0.0, %v177
    %v179 = vpop.f32.mrb[0].mxu0
    %v180 = vadd.f32 0.0, %v179
    %181 = vdwg.mxu0
    %v182 = vlaneseq
    %v183 = vand.u32 %v182, 127
    %v184 = vadd.s32 %v183, 128
    %s185 = smul.u32 0, 256
    %s186 = ssub.s32 250, %s185
    %v187 = vstv %s186
    %vm188 = vcmp.lt.s32.totalorder %v183, %v187
    %vm189 = vcmp.lt.s32.totalorder %v184, %v187
    %v190 = vsel %vm188, %v174, -1e+30
    %v191 = vsel %vm189, %v176, -1e+30
    %v192 = vsel %vm188, %v178, -1e+30
    %v193 = vsel %vm189, %v180, -1e+30
    %s194 = smul.u32 0, 16
    %v195 = vstv %s194
    %v196 = vadd.s32 %v195, %v183
    %v197 = vld [vmem:[%s3] sm:$0xff]
    %198 = vset.pattern.permute.xlu0 0
    %199 = vperm.xlu0 %198, %v197
    %v200 = vpop.permute.xlu0 %199
    %vm201 = vcmp.eq.s32.totalorder %v200, %v196
    %v202 = vsel %vm201, 1, 0
    %v203 = vcvt.s32.f32 %v202
    %v204 = vpack.c.bf16 %v203, %v203
    %p205 = scmp.eq.s32.totalorder 0, 0
    // Predicated region
    $region22: #{tpu_custom_call.1} parent=1 // pred_check
      %p206 = pneg %p205
    $region23: #{tpu_custom_call.1} parent=1 // pred_check_branch
      %208 = sbr.rel (%p206) target = $region25
    $region24: #{tpu_custom_call.1} parent=1 // pred_region
      %209 = vst [vmem:[#allocation8] sm:$0xff] 0.0
      %210 = vst [vmem:[#allocation8 + $0x8] sm:$0xff] 0.0
    $region25: #{tpu_custom_call.1} parent=1 // pred_fallthru
      _
    %v211 = vld [vmem:[#allocation8] sm:$0xff]
    %v212 = vld [vmem:[#allocation8 + $0x8] sm:$0xff]
    %v213 = vpack.c.bf16 %v192, %v190
    %v214 = vpack.c.bf16 %v193, %v191
    %vm215 = vcmask 130048
    %v217 = vsel %vm215, %v204, 0
    %219 = vmatprep.subr.bf16.mxu0 %v214
    %220 = vmatpush1.bf16.msra.mxu0 %v213
    %221 = vmatprep.subr.bf16.mxu0 0
    %222 = vmatpush1.bf16.msra.mxu0 0
    %223 = vmatprep.subr.bf16.mxu0 0
    %224 = vmatpush1.bf16.msra.mxu0 0
    %225 = vmatprep.subr.bf16.mxu0 0
    %226 = vmatpush1.bf16.msra.mxu0 0
    %227 = vmatprep.subr.bf16.mxu0 0
    %228 = vmatpush1.bf16.msra.mxu0 0
    %229 = vmatprep.subr.bf16.mxu0 0
    %230 = vmatpush1.bf16.msra.mxu0 0
    %231 = vmatprep.subr.bf16.mxu0 0
    %232 = vmatpush1.bf16.msra.mxu0 0
    %233 = vmatprep.subr.bf16.mxu0 0
    %234 = vmatpush1.bf16.msra.mxu0 0
    %235 = vmatprep.subr.bf16.mxu0 0
    %236 = vmatpush1.bf16.msra.mxu0 0
    %237 = vmatprep.subr.bf16.mxu0 0
    %238 = vmatpush1.bf16.msra.mxu0 0
    %239 = vmatprep.subr.bf16.mxu0 0
    %240 = vmatpush1.bf16.msra.mxu0 0
    %241 = vmatprep.subr.bf16.mxu0 0
    %242 = vmatpush1.bf16.msra.mxu0 0
    %243 = vmatprep.subr.bf16.mxu0 0
    %244 = vmatpush1.bf16.msra.mxu0 0
    %245 = vmatprep.subr.bf16.mxu0 0
    %246 = vmatpush1.bf16.msra.mxu0 0
    %247 = vmatprep.subr.bf16.mxu0 0
    %248 = vmatpush1.bf16.msra.mxu0 0
    %249 = vmatprep.subr.bf16.mxu0 0
    %250 = vmatpush1.bf16.msra.mxu0 0
    %251 = vmatprep.mubr.bf16.mxu0 0
    %252 = vmatmul.mubr.bf16.gmra.mrb[0].mxu0 %v217
    %v253 = vpop.f32.mrb[0].mxu0
    %v254 = vadd.f32 0.0, %v253
    %v255 = vpop.f32.mrb[0].mxu0
    %v256 = vadd.f32 0.0, %v255
    %v257 = vpop.f32.mrb[0].mxu0
    %v258 = vpop.f32.mrb[0].mxu0
    %259 = vdwg.mxu0
    %v260 = vadd.f32 %v211, %v254
    %v261 = vadd.f32 %v212, %v256
    %262 = vst [vmem:[#allocation8] sm:$0xff] %v260
    %263 = vst [vmem:[#allocation8 + $0x8] sm:$0xff] %v261
    %p264 = scmp.eq.s32.totalorder 0, 0
    // Predicated region
    $region26: #{tpu_custom_call.1} parent=1 // pred_check
      %p265 = pneg %p264
    $region27: #{tpu_custom_call.1} parent=1 // pred_check_branch
      %267 = sbr.rel (%p265) target = $region29
    $region28: #{tpu_custom_call.1} parent=1 // pred_region
      %s268 = scalar_lea.vmem [#allocation2], %s194
      %vm269 = vcmask 7168
      %270 = vst.msk [vmem:[%s268] sm:$0xff] %vm269, -inf
      %271 = vst.msk [vmem:[%s268 + $0x8] sm:$0xff] %vm269, -inf
      %s272 = scalar_lea.vmem [#allocation3], %s194
      %273 = vst.msk [vmem:[%s272] sm:$0xff] %vm269, 0.0
      %274 = vst.msk [vmem:[%s272 + $0x8] sm:$0xff] %vm269, 0.0
      %s275 = scalar_lea.vmem [#allocation4], %s194
      %276 = vst.msk [vmem:[%s275] sm:$0xff] %vm269, 0.0
      %277 = vst.msk [vmem:[%s275 + $0x8] sm:$0xff] %vm269, 0.0
    $region29: #{tpu_custom_call.1} parent=1 // pred_fallthru
      _
    %s278 = scalar_lea.vmem [#allocation2], %s194
    %v279 = vld [vmem:[%s278] sm:$0xff]
    %v280 = vld [vmem:[%s278 + $0x8] sm:$0xff]
    %v281 = vmax.f32 %v190, %v191
    %282 = vmax.xlane.f32.xlu0 %v281
    %v283 = vpop.xlane.xlu0 %282
    %v284 = vmax.f32 %v192, %v193
    %285 = vmax.xlane.f32.xlu0 %v284
    %v286 = vpop.xlane.xlu0 %285
    %v287 = vmax.f32 %v279, %v283
    %v288 = vmax.f32 %v280, %v286
    %290 = vset.pattern.permute.xlu0 0
    %291 = vperm.xlu0 %290, %v287
    %v292 = vpop.permute.xlu0 %291
    %295 = vset.pattern.permute.xlu0 0
    %296 = vperm.xlu0 %295, %v288
    %v297 = vpop.permute.xlu0 %296
    %v299 = vsub.f32 %v190, %v292
    %v300 = vsub.f32 %v191, %v292
    %v301 = vsub.f32 %v192, %v297
    %v302 = vsub.f32 %v193, %v297
    %v303 = vmul.f32 %v299, 1.442695
    %v304 = vpow.pop %v303
    %v305 = vmul.f32 %v300, 1.442695
    %v306 = vpow.pop %v305
    %v307 = vmul.f32 %v301, 1.442695
    %v308 = vpow.pop %v307
    %v309 = vmul.f32 %v302, 1.442695
    %v310 = vpow.pop %v309
    %v311 = vsub.f32 %v279, %v287
    %v312 = vsub.f32 %v280, %v288
    %v313 = vmul.f32 %v311, 1.442695
    %v314 = vpow.pop %v313
    %v315 = vmul.f32 %v312, 1.442695
    %v316 = vpow.pop %v315
    %s317 = scalar_lea.vmem [#allocation3], %s194
    %v318 = vld [vmem:[%s317] sm:$0xff]
    %v319 = vld [vmem:[%s317 + $0x8] sm:$0xff]
    %v320 = vmul.f32 %v314, %v318
    %v321 = vmul.f32 %v316, %v319
    %v322 = vadd.f32 %v304, %v306
    %323 = vadd.xlane.f32.xlu0 %v322
    %v324 = vpop.xlane.xlu0 %323
    %v325 = vadd.f32 %v308, %v310
    %326 = vadd.xlane.f32.xlu0 %v325
    %v327 = vpop.xlane.xlu0 %326
    %v328 = vadd.f32 %v320, %v324
    %v329 = vadd.f32 %v321, %v327
    %vm330 = vcmask 7168
    %331 = vst.msk [vmem:[%s317] sm:$0xff] %vm330, %v328
    %332 = vst.msk [vmem:[%s317 + $0x8] sm:$0xff] %vm330, %v329
    %333 = vst.msk [vmem:[%s278] sm:$0xff] %vm330, %v287
    %334 = vst.msk [vmem:[%s278 + $0x8] sm:$0xff] %vm330, %v288
    %v335 = vld [vmem:[%s2] sm:$0xff]
    %v336 = vld [vmem:[%s2 + $0x8] sm:$0xff]
    %v337 = vstv %s185
    %v338 = vsub.s32 %v335, %v337
    %v339 = vsub.s32 %v336, %v337
    %340 = vset.pattern.permute.xlu0 0
    %341 = vperm.xlu0 %340, %v338
    %v342 = vpop.permute.xlu0 %341
    %343 = vset.pattern.permute.xlu0 0
    %344 = vperm.xlu0 %343, %v339
    %v345 = vpop.permute.xlu0 %344
    %vm346 = vcmp.eq.s32.totalorder %v183, %v342
    %vm347 = vcmp.eq.s32.totalorder %v184, %v342
    %vm348 = vcmp.eq.s32.totalorder %v183, %v345
    %vm349 = vcmp.eq.s32.totalorder %v184, %v345
    %s350 = scalar_lea.vmem [#allocation4], %s194
    %v351 = vld [vmem:[%s350] sm:$0xff]
    %v352 = vld [vmem:[%s350 + $0x8] sm:$0xff]
    %v353 = vsel %vm346, %v190, 0.0
    %v354 = vsel %vm347, %v191, 0.0
    %v355 = vsel %vm348, %v192, 0.0
    %v356 = vsel %vm349, %v193, 0.0
    %v357 = vadd.f32 %v353, %v354
    %358 = vadd.xlane.f32.xlu0 %v357
    %v359 = vpop.xlane.xlu0 %358
    %v360 = vadd.f32 %v355, %v356
    %361 = vadd.xlane.f32.xlu0 %v360
    %v362 = vpop.xlane.xlu0 %361
    %v363 = vadd.f32 %v351, %v359
    %v364 = vadd.f32 %v352, %v362
    %365 = vst.msk [vmem:[%s350] sm:$0xff] %vm330, %v363
    %366 = vst.msk [vmem:[%s350 + $0x8] sm:$0xff] %vm330, %v364
    // Predicated region
    $region30: #{tpu_custom_call.1} parent=1 // pred_check
      %p367 = pneg %p264
    $region31: #{tpu_custom_call.1} parent=1 // pred_check_branch
      %369 = sbr.rel (%p367) target = $region33
    $region32: #{tpu_custom_call.1} parent=1 // pred_region
      %v370 = vld [vmem:[%s350] sm:$0xff]
      %v371 = vld [vmem:[%s350 + $0x8] sm:$0xff]
      %v372 = vld [vmem:[%s278] sm:$0xff]
      %v373 = vld [vmem:[%s278 + $0x8] sm:$0xff]
      %v374 = vsub.f32 %v370, %v372
      %v375 = vsub.f32 %v371, %v373
      %v376 = vmul.f32 %v374, 1.442695
      %v377 = vpow.pop %v376
      %v378 = vmul.f32 %v375, 1.442695
      %v379 = vpow.pop %v378
      %v380 = vld [vmem:[%s317] sm:$0xff]
      %v381 = vld [vmem:[%s317 + $0x8] sm:$0xff]
      %v382 = vrcp.pop %v380
      %v383 = vmul.f32 %v377, %v382
      %v384 = vrcp.pop %v381
      %v385 = vmul.f32 %v379, %v384
      %v386 = vadd.f32 %v383, 1e-06
      %v387 = vadd.f32 %v385, 1e-06
      %v388 = vlog2.pop %v386
      %v389 = vmul.f32 %v388, 0.6931472
      %v390 = vlog2.pop %v387
      %v391 = vmul.f32 %v390, 0.6931472
      %392 = vst.msk [vmem:[%s5] sm:$0xff] %vm330, %v389
      %393 = vst.msk [vmem:[%s5 + $0x8] sm:$0xff] %vm330, %v391
    $region33: #{tpu_custom_call.1} parent=1 // pred_fallthru
      _
    // Predicated region
    $region34: #{tpu_custom_call.1} parent=1 // pred_check
      _
    $region35: #{tpu_custom_call.1} parent=1 // pred_check_branch
      %395 = sbr.rel (0) target = $region37
    $region36: #{tpu_custom_call.1} parent=1 // pred_region
      %s397 = ssub.s32 256, 256
      %398 = vsyncadd [#allocation7], %s397
      %s400 = sshll.u32 [#allocation8], 4
      %s401 = int_to_ptr.vmem [resolvable:$true] %s400
      %403 = dma.vmem_to_hbm [thread:$0]  %s401, 256, %s4, [#allocation7]
    $region37: #{tpu_custom_call.1} parent=1 // pred_fallthru
      _
    // Predicated region
    $region38: #{tpu_custom_call.1} parent=1 // pred_check
      _
    $region39: #{tpu_custom_call.1} parent=1 // pred_check_branch
      %405 = sbr.rel (0) target = $region41
    $region40: #{tpu_custom_call.1} parent=1 // pred_region
      _
    $region41: #{tpu_custom_call.1} parent=1 // pred_fallthru
      _
    // Predicated region
    $region42: #{tpu_custom_call.1} parent=1 // pred_check
      _
    $region43: #{tpu_custom_call.1} parent=1 // pred_check_branch
      %407 = sbr.rel (0) target = $region45
    $region44: #{tpu_custom_call.1} parent=1 // pred_region
      %408 = dma.done [#allocation7], 256
    $region45: #{tpu_custom_call.1} parent=1 // pred_fallthru
      _
    // Predicated region
    $region46: #{tpu_custom_call.1} parent=1 // pred_check
      _
    $region47: #{tpu_custom_call.1} parent=1 // pred_check_branch
      %410 = sbr.rel (0) target = $region49
    $region48: #{tpu_custom_call.1} parent=1 // pred_region
      _
    $region49: #{tpu_custom_call.1} parent=1 // pred_fallthru
      _
    %411 = vsyncpa [#allocation6], 1
    %412 = vsyncpa [#allocation7], 1

</llo_original>
